<compile_context>
chip_gen: v5e
topology: v5e:2x2
jax: 0.10.0
libtpu: 0.0.40
codegen_flags: <defaults>
</compile_context>

<pallas_src>
import math

import jax
import jax.numpy as jnp
from jax.experimental import pallas as pl
from jax.experimental.pallas import tpu as pltpu


def _embed_kernel(x_ref, w_ref, pe_ref, o_ref):
    # x_ref: (TL, c_in)  w_ref: (c_in, E)  pe_ref: (TL, E)  o_ref: (TL, E)
    # Token embedding on the MXU with f32 accumulation; PE add in f32, cast on store.
    val = jnp.dot(x_ref[...], w_ref[...], preferred_element_type=jnp.float32)
    o_ref[...] = (val + pe_ref[...].astype(jnp.float32)).astype(o_ref.dtype)


def _pick_seq_tile(L, c_in, E, itemsize, cap=2048, vmem_budget_bytes=12 * 1024 * 1024):
    """Largest dtype-aligned sequence tile under a conservative double-buffered VMEM budget."""
    sub = max(8, 32 // itemsize)                 # sublane multiple: f32->8, bf16->16, int8->32
    per_row = 2 * (c_in + 2 * E) * itemsize      # double-buffered x + pe + out bytes per row
    tl = min(cap, max(sub, vmem_budget_bytes // per_row))
    tl = max(sub, (tl // sub) * sub)
    l_ceil = ((L + sub - 1) // sub) * sub        # never larger than L rounded up to `sub`
    return min(tl, l_ceil)


def make_positional_embedding(max_len, embed_dim, dtype=jnp.float32):
    """Matches PositionalEmbedding: pe[:, 0::2]=sin, pe[:, 1::2]=cos."""
    pos = jnp.arange(max_len, dtype=jnp.float32)[:, None]                     # (max_len, 1)
    div = jnp.exp(jnp.arange(0, embed_dim, 2, dtype=jnp.float32)
                  * (-(math.log(10000.0) / embed_dim)))                       # (E//2,)
    ang = pos * div                                                           # (max_len, E//2)
    pe = jnp.stack([jnp.sin(ang), jnp.cos(ang)], axis=-1)                     # (max_len, E//2, 2)
    return pe.reshape(max_len, embed_dim).astype(dtype)


def data_embedding(x, w, pe):
    """x: (B, L, c_in); w: (E, c_in) [Conv1d k=1 weight, squeezed]; pe: (max_len, E)."""
    B, L, c_in = x.shape
    E = w.shape[0]
    assert pe.shape[1] == E and pe.shape[0] >= L

    itemsize = jnp.dtype(x.dtype).itemsize
    TL = _pick_seq_tile(L, c_in, E, itemsize)
    num_i = pl.cdiv(L, TL)
    L_pad = num_i * TL
    assert L_pad % TL == 0

    # Pad the sequence axis if TL does not divide L (no silent truncation, bounded tiles).
    if L_pad != L:
        x = jnp.pad(x, ((0, 0), (0, L_pad - L), (0, 0)))
    if pe.shape[0] >= L_pad:
        pe_slab = pe[:L_pad]
    else:
        pe_slab = jnp.pad(pe, ((0, L_pad - pe.shape[0]), (0, 0)))
    pe_slab = pe_slab.astype(x.dtype)

    # Pre-transposed weight: (c_in, E) -> E on lanes, K on sublanes (MXU-native rhs layout).
    w_t = jnp.asarray(w, dtype=x.dtype).T

    out = pl.pallas_call(
        _embed_kernel,
        out_shape=jax.ShapeDtypeStruct((B, L_pad, E), x.dtype),
        # Sequence-tile outer, batch innermost: PE block index is constant across
        # consecutive steps, so the PE tile stays resident (no re-DMA per batch element).
        grid=(num_i, B),
        in_specs=[
            pl.BlockSpec((None, TL, c_in), lambda i, b: (b, i, 0)),   # x tile (batch squeezed)
            pl.BlockSpec((c_in, E), lambda i, b: (0, 0)),             # weight, resident
            pl.BlockSpec((TL, E), lambda i, b: (i, 0)),               # PE tile, batch-invariant
        ],
        out_specs=pl.BlockSpec((None, TL, E), lambda i, b: (b, i, 0)),
        compiler_params=pltpu.CompilerParams(
            dimension_semantics=("parallel", "parallel"),
        ),
    )(x, w_t, pe_slab)
    # TODO(synk): nn.Dropout(p=0.1) is identity at inference; training-mode dropout would
    # need pltpu.prng_seed / prng_random_bits inside the kernel.
    if L_pad != L:
        out = out[:, :L, :]
    return out


def data_embedding_ref(x, w, pe):
    """Pure-JAX reference matching the PyTorch forward (eval mode)."""
    val = jnp.einsum("blc,ec->ble", x, w)
    return val + pe[None, : x.shape[1], :]


if __name__ == "__main__":
    # Small shapes consistent with the module: B=2, L=128 timesteps, c_in=8 features,
    # embed_dim=128 (lane-dense output), PE table length 256.
    B, L, c_in, E = 2, 128, 8, 128
    max_len = 256

    key = jax.random.PRNGKey(0)
    kx, kw = jax.random.split(key)
    x = jax.random.normal(kx, (B, L, c_in), dtype=jnp.float32)
    # Kaiming-normal-ish init for the k=1 conv weight (fan_in = c_in), squeezed to (E, c_in).
    w = jax.random.normal(kw, (E, c_in), dtype=jnp.float32) * (math.sqrt(2.0) / math.sqrt(c_in))
    pe = make_positional_embedding(max_len, E)

    out = data_embedding(x, w, pe)
    out = jax.block_until_ready(out)

    ref = data_embedding_ref(x, w, pe)
    assert out.shape == (B, L, E)
    assert jnp.allclose(out, ref, atol=1e-5, rtol=1e-5), "mismatch vs JAX reference"

    print("KERNEL_OK")
</pallas_src>

<mosaic_0001>
module attributes {stable_mosaic.version = 11 : i64} {
  func.func @_embed_kernel(%arg0: i32, %arg1: i32, %arg2: memref<1x128x8xf32, #tpu.memory_space<vmem>>, %arg3: memref<8x128xf32, #tpu.memory_space<vmem>>, %arg4: memref<128x128xf32, #tpu.memory_space<vmem>>, %arg5: memref<1x128x128xf32, #tpu.memory_space<vmem>>) attributes {dimension_semantics = [#tpu.dimension_semantics<parallel>, #tpu.dimension_semantics<parallel>], iteration_bounds = array<i64: 1, 2>, scalar_prefetch = 0 : i64, scratch_operands = 0 : i64, tpu.core_type = #tpu.core_type<tc>, window_params = [{transform_indices = @transform_0, window_bounds = array<i64: 1, 128, 8>}, {pipeline_mode = #tpu.pipeline_mode<synchronous>, transform_indices = @transform_1, window_bounds = array<i64: 8, 128>}, {transform_indices = @transform_2, window_bounds = array<i64: 128, 128>}, {transform_indices = @transform_3, window_bounds = array<i64: 1, 128, 128>}]} {
    %c0 = arith.constant 0 : index
    %c0_0 = arith.constant 0 : index
    %c0_1 = arith.constant 0 : index
    %0 = vector.load %arg2[%c0, %c0_0, %c0_1] : memref<1x128x8xf32, #tpu.memory_space<vmem>>, vector<1x128x8xf32>
    %1 = vector.shape_cast %0 : vector<1x128x8xf32> to vector<128x8xf32>
    %c0_2 = arith.constant 0 : index
    %c0_3 = arith.constant 0 : index
    %2 = vector.load %arg3[%c0_2, %c0_3] : memref<8x128xf32, #tpu.memory_space<vmem>>, vector<8x128xf32>
    %cst = arith.constant dense<0.000000e+00> : vector<128x128xf32>
    %3 = tpu.matmul %1, %2, %cst {dimension_numbers = #tpu.dot_dimension_numbers<[1], [0], [0], [1], [0, 0, 1, 1], [], []>} : vector<128x8xf32>, vector<8x128xf32>, vector<128x128xf32> -> vector<128x128xf32>
    %c0_4 = arith.constant 0 : index
    %c0_5 = arith.constant 0 : index
    %4 = vector.load %arg4[%c0_4, %c0_5] : memref<128x128xf32, #tpu.memory_space<vmem>>, vector<128x128xf32>
    %5 = arith.addf %3, %4 : vector<128x128xf32>
    %c0_6 = arith.constant 0 : index
    %c0_7 = arith.constant 0 : index
    %c0_8 = arith.constant 0 : index
    %6 = vector.load %arg5[%c0_6, %c0_7, %c0_8] : memref<1x128x128xf32, #tpu.memory_space<vmem>>, vector<1x128x128xf32>
    %7 = vector.shape_cast %6 : vector<1x128x128xf32> to vector<128x128xf32>
    %8 = vector.shape_cast %5 : vector<128x128xf32> to vector<1x128x128xf32>
    tpu.vector_store %arg5[%c0_6, %c0_7, %c0_8], %8 {strides = array<i32>} : memref<1x128x128xf32, #tpu.memory_space<vmem>>, vector<1x128x128xf32>,
    return
  }
  func.func @transform_0(%arg0: i32, %arg1: i32) -> (i32, i32, i32) {
    %c0_i32 = arith.constant 0 : i32
    %c0_i32_0 = arith.constant 0 : i32
    return %arg1, %arg0, %c0_i32 : i32, i32, i32
  }
  func.func @transform_1(%arg0: i32, %arg1: i32) -> (i32, i32) {
    %c0_i32 = arith.constant 0 : i32
    %c0_i32_0 = arith.constant 0 : i32
    %c0_i32_1 = arith.constant 0 : i32
    return %c0_i32, %c0_i32_0 : i32, i32
  }
  func.func @transform_2(%arg0: i32, %arg1: i32) -> (i32, i32) {
    %c0_i32 = arith.constant 0 : i32
    %c0_i32_0 = arith.constant 0 : i32
    return %arg0, %c0_i32 : i32, i32
  }
  func.func @transform_3(%arg0: i32, %arg1: i32) -> (i32, i32, i32) {
    %c0_i32 = arith.constant 0 : i32
    %c0_i32_0 = arith.constant 0 : i32
    return %arg1, %arg0, %c0_i32 : i32, i32, i32
  }
}

</mosaic_0001>

<llo_original>
// kernel: tpu_custom_call.1
$region0: #{tpu_custom_call.1}
  #allocation0 [shape = 'u32[]', space=smem, size = 0x4, offset = 0x4, fixed_abs, tag = 'smem constant byte address 0x4 - core index']
  #allocation1 [shape = 'u32[72,128]{1,0:T(1,128)}', space=vmem, size = 0x9000, scoped, tag = 'internal scratch']
  %s0 = inlined_call_operand.vmem [shape: f32[2,128,8], index: 0, kind: input, shape index: {}]
  %s1 = inlined_call_operand.vmem [shape: f32[8,128], index: 1, kind: input, shape index: {}]
  %s2 = inlined_call_operand.vmem [shape: f32[128,128], index: 2, kind: input, shape index: {}]
  %s3 = inlined_call_operand.hbm [shape: f32[2,128,128], index: 3, kind: output, shape index: {}]
  %s4 = sld [smem:[#allocation0]]
  $region45: #{tpu_custom_call.1} parent=0
    _
  %s6 = ssub.s32 1, %s4
  %s7 = scalar_select 0, %s6, %s4
  $region1: #{tpu_custom_call.1} parent=0
    #allocation2 [shape = 'u8[131072]{0}', space=vmem, size = 0x20000, scoped, tag = 'output window, operand 0']
    #allocation3 [shape = 's32[2]{0}', space=sflag, size = 0x8, scoped, tag = 'scoped memory for tpu_custom_call.1']
    %8 = vsyncpa [#allocation3], 0
    %s9 = scalar_lea.sflag [#allocation3], 1
    %10 = vsyncpa %s9, 0
    loop: start=0, step=1, limit=4
    $region2: #{tpu_custom_call.1} parent=1 // loop_pre_header
      _
    $region3: #{tpu_custom_call.1} parent=1 // loop_header
      %s12 = sphi 0, %s16
      %p13 = scmp.ge.s32.totalorder %s12, 4
      %s19 = sphi 0, %s31
      %s20 = sphi 0, %s27
      %s21 = sphi 0, %s19
      %s22 = sphi 0, %s20
      %s23 = sphi 0, %s21
      %s24 = sphi 0, %s22
      %s36 = sphi 0, %s38
      %s39 = sphi 0, %s36
      %s40 = sphi 0, %s39
      %s56 = sphi 0, %s40
      %s60 = sphi 0, %s60
      %s62 = sphi 0, %s60
      %s63 = sphi 0, %s62
      %s77 = sphi 0, %s63
      %s83 = sphi 0, %s85
      %s86 = sphi 0, %s83
      %s87 = sphi 0, %s86
      %s103 = sphi 0, %s87
      %s111 = sphi 0, %s113
      %s114 = sphi 0, %s111
      %s115 = sphi 0, %s114
      %s131 = sphi 0, %s115
    $region4: #{tpu_custom_call.1} parent=1 // loop_header_branch
      %15 = sbr.rel (%p13) target = $region8
    $region5: #{tpu_custom_call.1} parent=1 // loop_body
      %s17 = ssub.s32 %s12, 1
      %s18 = ssub.s32 %s12, 2
      %s25 = sadd.s32 1, %s20
      %p26 = scmp.ge.s32.totalorder %s25, 2
      %s27 = scalar_select %p26, 0, %s25
      %s28 = sadd.s32 1, %s19
      %s29 = scalar_select %p26, %s28, %s19
      %p30 = scmp.ge.s32.totalorder %s29, 1
      %s31 = scalar_select %p30, 0, %s29
      %s32 = ssub.s32 %s20, %s27
      %s33 = ssub.s32 %s19, %s31
      %s34 = sor.u32 %s32, %s33
      %p35 = scmp.eq.s32.totalorder %s34, 0
      %s37 = sadd.s32 %s36, 1
      %s38 = scalar_select %p35, %s36, %s37
      %p41 = pneg %p35
      %p42 = scmp.eq.s32.totalorder %s12, 1
      %p43 = por %p41, %p42
      %p44 = scmp.ne.s32.totalorder %s36, %s39
      %p45 = scmp.eq.s32.totalorder %s12, 0
      %p46 = por %p44, %p45
      %p47 = scmp.ne.s32.totalorder %s36, %s39
      %p48 = scmp.eq.s32.totalorder %s17, 1
      %p49 = por %p47, %p48
      %p50 = scmp.ne.s32.totalorder %s39, %s40
      %p51 = scmp.eq.s32.totalorder %s17, 0
      %p52 = por %p50, %p51
      %p53 = scmp.ne.s32.totalorder %s39, %s40
      %p54 = scmp.eq.s32.totalorder %s18, 1
      %p55 = por %p53, %p54
      %p57 = scmp.ne.s32.totalorder %s40, %s56
      %p58 = scmp.eq.s32.totalorder %s18, 0
      %p59 = por %p57, %p58
      %s61 = sadd.s32 %s60, 1
      %p64 = scmp.eq.s32.totalorder %s12, 1
      %p65 = scmp.ne.s32.totalorder %s60, %s62
      %p66 = scmp.eq.s32.totalorder %s12, 0
      %p67 = por %p65, %p66
      %p68 = scmp.ne.s32.totalorder %s60, %s62
      %p69 = scmp.eq.s32.totalorder %s17, 1
      %p70 = por %p68, %p69
      %p71 = scmp.ne.s32.totalorder %s62, %s63
      %p72 = scmp.eq.s32.totalorder %s17, 0
      %p73 = por %p71, %p72
      %p74 = scmp.ne.s32.totalorder %s62, %s63
      %p75 = scmp.eq.s32.totalorder %s18, 1
      %p76 = por %p74, %p75
      %p78 = scmp.ne.s32.totalorder %s63, %s77
      %p79 = scmp.eq.s32.totalorder %s18, 0
      %p80 = por %p78, %p79
      %s81 = ssub.s32 %s19, %s31
      %p82 = scmp.eq.s32.totalorder %s81, 0
      %s84 = sadd.s32 %s83, 1
      %s85 = scalar_select %p82, %s83, %s84
      %p88 = pneg %p82
      %p89 = scmp.eq.s32.totalorder %s12, 1
      %p90 = por %p88, %p89
      %p91 = scmp.ne.s32.totalorder %s83, %s86
      %p92 = scmp.eq.s32.totalorder %s12, 0
      %p93 = por %p91, %p92
      %p94 = scmp.ne.s32.totalorder %s83, %s86
      %p95 = scmp.eq.s32.totalorder %s17, 1
      %p96 = por %p94, %p95
      %p97 = scmp.ne.s32.totalorder %s86, %s87
      %p98 = scmp.eq.s32.totalorder %s17, 0
      %p99 = por %p97, %p98
      %p100 = scmp.ne.s32.totalorder %s86, %s87
      %p101 = scmp.eq.s32.totalorder %s18, 1
      %p102 = por %p100, %p101
      %p104 = scmp.ne.s32.totalorder %s87, %s103
      %p105 = scmp.eq.s32.totalorder %s18, 0
      %p106 = por %p104, %p105
      %s107 = ssub.s32 %s20, %s27
      %s108 = ssub.s32 %s19, %s31
      %s109 = sor.u32 %s107, %s108
      %p110 = scmp.eq.s32.totalorder %s109, 0
      %s112 = sadd.s32 %s111, 1
      %s113 = scalar_select %p110, %s111, %s112
      %p116 = pneg %p110
      %p117 = scmp.eq.s32.totalorder %s12, 1
      %p118 = por %p116, %p117
      %p119 = scmp.ne.s32.totalorder %s111, %s114
      %p120 = scmp.eq.s32.totalorder %s12, 0
      %p121 = por %p119, %p120
      %p122 = scmp.ne.s32.totalorder %s111, %s114
      %p123 = scmp.eq.s32.totalorder %s17, 1
      %p124 = por %p122, %p123
      %p125 = scmp.ne.s32.totalorder %s114, %s115
      %p126 = scmp.eq.s32.totalorder %s17, 0
      %p127 = por %p125, %p126
      %p128 = scmp.ne.s32.totalorder %s114, %s115
      %p129 = scmp.eq.s32.totalorder %s18, 1
      %p130 = por %p128, %p129
      %p132 = scmp.ne.s32.totalorder %s115, %s131
      %p133 = scmp.eq.s32.totalorder %s18, 0
      %p134 = por %p132, %p133
      %p135 = scmp.le.s32.totalorder 1, %s12
      %p136 = scmp.lt.s32.totalorder %s12, 3
      %p137 = pnand %p135, %p136
      %p138 = pneg %p137
      // Predicated region
      $region9: #{tpu_custom_call.1} parent=5 // pred_check
        _
      $region10: #{tpu_custom_call.1} parent=5 // pred_check_branch
        %140 = sbr.rel (%p137) target = $region12
      $region11: #{tpu_custom_call.1} parent=5 // pred_region
        %s141 = ssub.s32 %s12, 1
        // Predicated region
        $region13: #{tpu_custom_call.1} parent=11 // pred_check
          %p142 = pneg %p73
        $region14: #{tpu_custom_call.1} parent=11 // pred_check_branch
          %144 = sbr.rel (%p142) target = $region16
        $region15: #{tpu_custom_call.1} parent=11 // pred_region
          _
        $region16: #{tpu_custom_call.1} parent=11 // pred_fallthru
          _
        // Predicated region
        $region17: #{tpu_custom_call.1} parent=11 // pred_check
          %p145 = pneg %p99
        $region18: #{tpu_custom_call.1} parent=11 // pred_check_branch
          %147 = sbr.rel (%p145) target = $region20
        $region19: #{tpu_custom_call.1} parent=11 // pred_region
          %s148 = smul.u32 16, %s21
          %p149 = scmp.lt.s32.totalorder %s148, 15
          %s150 = scalar_select %p149, %s148, 15
          %s151 = smul.addr %s150, 8
          %s152 = scalar_lea.vmem %s2, %s151
          %s153 = smul.u32 16, %s21
        $region20: #{tpu_custom_call.1} parent=11 // pred_fallthru
          _
      $region12: #{tpu_custom_call.1} parent=5 // pred_fallthru
        _
      %p154 = scmp.lt.s32.totalorder %s12, 2
      // Predicated region
      $region21: #{tpu_custom_call.1} parent=5 // pred_check
        %p155 = pneg %p154
      $region22: #{tpu_custom_call.1} parent=5 // pred_check_branch
        %157 = sbr.rel (%p155) target = $region24
      $region23: #{tpu_custom_call.1} parent=5 // pred_region
        // Predicated region
        $region25: #{tpu_custom_call.1} parent=23 // pred_check
          %p158 = pneg %p46
        $region26: #{tpu_custom_call.1} parent=23 // pred_check_branch
          %160 = sbr.rel (%p158) target = $region28
        $region27: #{tpu_custom_call.1} parent=23 // pred_region
          %s161 = smul.u32 16, %s19
          %p162 = scmp.lt.s32.totalorder %s20, 1
          %s163 = scalar_select %p162, %s20, 1
          %p164 = scmp.lt.s32.totalorder %s161, 15
          %s165 = scalar_select %p164, %s161, 15
          %s166 = smul.addr %s163, 16
          %s167 = sadd.s32 %s165, %s166
          %s168 = smul.addr %s167, 8
          %s169 = scalar_lea.vmem %s0, %s168
          %s170 = smul.u32 16, %s19
        $region28: #{tpu_custom_call.1} parent=23 // pred_fallthru
          _
      $region24: #{tpu_custom_call.1} parent=5 // pred_fallthru
        _
      %p171 = scmp.le.s32.totalorder 1, %s12
      %p172 = scmp.lt.s32.totalorder %s12, 3
      %p173 = pnand %p171, %p172
      %p174 = pneg %p173
      // Predicated region
      $region29: #{tpu_custom_call.1} parent=5 // pred_check
        _
      $region30: #{tpu_custom_call.1} parent=5 // pred_check_branch
        %176 = sbr.rel (%p173) target = $region32
      $region31: #{tpu_custom_call.1} parent=5 // pred_region
        %s177 = ssub.s32 %s12, 1
        %s178 = smul.u32 16, %s21
        %p179 = scmp.lt.s32.totalorder %s22, 1
        %s180 = scalar_select %p179, %s22, 1
        %p181 = scmp.lt.s32.totalorder %s178, 15
        %s182 = scalar_select %p181, %s178, 15
        %s183 = smul.addr %s180, 16
        %s184 = sadd.s32 %s182, %s183
        %s185 = smul.addr %s184, 8
        %s186 = scalar_lea.vmem %s0, %s185
        %p187 = pneg %p52
        %p188 = pneg %p49
        %p189 = pneg %p73
        %p190 = pneg %p70
        %s191 = smul.u32 16, %s21
        %p192 = scmp.lt.s32.totalorder %s191, 15
        %s193 = scalar_select %p192, %s191, 15
        %s194 = smul.addr %s193, 8
        %s195 = scalar_lea.vmem %s2, %s194
        %p196 = pneg %p99
        %p197 = pneg %p96
        %p198 = pneg %p127
        %p199 = pneg %p124
        %s200 = sand.u32 %s114, 1
        %s201 = scalar_lea.sflag [#allocation3], %s200
        %s202 = sand.u32 %s114, 1
        %s203 = smul.addr %s202, 128
        %s204 = scalar_lea.vmem [#allocation2], %s203
        %s205 = smul.u32 16, %s21
        %p206 = scmp.lt.s32.totalorder %s22, 1
        %s207 = scalar_select %p206, %s22, 1
        %p208 = scmp.lt.s32.totalorder %s205, 15
        %s209 = scalar_select %p208, %s205, 15
        %s210 = smul.addr %s207, 16
        %s211 = sadd.s32 %s209, %s210
        %s212 = smul.addr %s211, 8
        %s213 = scalar_lea.vmem %s0, %s212
        %s214 = smul.u32 16, %s21
        %s215 = smul.u32 16, %s21
        %p216 = scmp.lt.s32.totalorder %s215, 15
        %s217 = scalar_select %p216, %s215, 15
        %s218 = smul.addr %s217, 8
        %s219 = scalar_lea.vmem %s2, %s218
        %s220 = smul.u32 16, %s21
        %s221 = smul.u32 16, %s21
        %v222 = vld [vmem:[%s213] sm:$0xff]
        %v223 = vld [vmem:[%s213 + $0x8] sm:$0xff]
        %v224 = vld [vmem:[%s213 + $0x10] sm:$0xff]
        %v225 = vld [vmem:[%s213 + $0x18] sm:$0xff]
        %v226 = vld [vmem:[%s213 + $0x20] sm:$0xff]
        %v227 = vld [vmem:[%s213 + $0x28] sm:$0xff]
        %v228 = vld [vmem:[%s213 + $0x30] sm:$0xff]
        %v229 = vld [vmem:[%s213 + $0x38] sm:$0xff]
        %v230 = vld [vmem:[%s213 + $0x40] sm:$0xff]
        %v231 = vld [vmem:[%s213 + $0x48] sm:$0xff]
        %v232 = vld [vmem:[%s213 + $0x50] sm:$0xff]
        %v233 = vld [vmem:[%s213 + $0x58] sm:$0xff]
        %v234 = vld [vmem:[%s213 + $0x60] sm:$0xff]
        %v235 = vld [vmem:[%s213 + $0x68] sm:$0xff]
        %v236 = vld [vmem:[%s213 + $0x70] sm:$0xff]
        %v237 = vld [vmem:[%s213 + $0x78] sm:$0xff]
        %v238 = vld [vmem:[%s1] sm:$0xff]
        %v239 = vld [vmem:[%s219] sm:$0xff]
        %v240 = vld [vmem:[%s219 + $0x8] sm:$0xff]
        %v241 = vld [vmem:[%s219 + $0x10] sm:$0xff]
        %v242 = vld [vmem:[%s219 + $0x18] sm:$0xff]
        %v243 = vld [vmem:[%s219 + $0x20] sm:$0xff]
        %v244 = vld [vmem:[%s219 + $0x28] sm:$0xff]
        %v245 = vld [vmem:[%s219 + $0x30] sm:$0xff]
        %v246 = vld [vmem:[%s219 + $0x38] sm:$0xff]
        %v247 = vld [vmem:[%s219 + $0x40] sm:$0xff]
        %v248 = vld [vmem:[%s219 + $0x48] sm:$0xff]
        %v249 = vld [vmem:[%s219 + $0x50] sm:$0xff]
        %v250 = vld [vmem:[%s219 + $0x58] sm:$0xff]
        %v251 = vld [vmem:[%s219 + $0x60] sm:$0xff]
        %v252 = vld [vmem:[%s219 + $0x68] sm:$0xff]
        %v253 = vld [vmem:[%s219 + $0x70] sm:$0xff]
        %v254 = vld [vmem:[%s219 + $0x78] sm:$0xff]
        %vm255 = vcmask 64512
        %v257 = vsel %vm255, %v222, 0
        %v260 = vsel %vm255, %v223, 0
        %v263 = vsel %vm255, %v224, 0
        %v266 = vsel %vm255, %v225, 0
        %v269 = vsel %vm255, %v226, 0
        %v272 = vsel %vm255, %v227, 0
        %v275 = vsel %vm255, %v228, 0
        %v278 = vsel %vm255, %v229, 0
        %v281 = vsel %vm255, %v230, 0
        %v284 = vsel %vm255, %v231, 0
        %v287 = vsel %vm255, %v232, 0
        %v290 = vsel %vm255, %v233, 0
        %v293 = vsel %vm255, %v234, 0
        %v296 = vsel %vm255, %v235, 0
        %v299 = vsel %vm255, %v236, 0
        %v302 = vsel %vm255, %v237, 0
        %304 = vmatpush.msra.mxu0 0.0
        %305 = vmatpush.msra.mxu0 0.0
        %306 = vmatpush.msra.mxu0 0.0
        %307 = vmatpush.msra.mxu0 0.0
        %308 = vmatpush.msra.mxu0 0.0
        %309 = vmatpush.msra.mxu0 0.0
        %310 = vmatpush.msra.mxu0 0.0
        %311 = vmatpush.msra.mxu0 0.0
        %312 = vmatpush.msra.mxu0 0.0
        %313 = vmatpush.msra.mxu0 0.0
        %314 = vmatpush.msra.mxu0 0.0
        %315 = vmatpush.msra.mxu0 0.0
        %316 = vmatpush.msra.mxu0 0.0
        %317 = vmatpush.msra.mxu0 0.0
        %318 = vmatpush.msra.mxu0 0.0
        %319 = vmatpush.msra.mxu0 %v238
        %320 = vmatmul.f32.gmra.mxu0 %v257
        %v321 = vpop.f32.mrf.mxu0
        %v322 = vadd.f32 %v239, %v321
        %323 = vmatmul.f32.gmra.mxu0 %v260
        %v324 = vpop.f32.mrf.mxu0
        %v325 = vadd.f32 %v240, %v324
        %326 = vmatmul.f32.gmra.mxu0 %v263
        %v327 = vpop.f32.mrf.mxu0
        %v328 = vadd.f32 %v241, %v327
        %329 = vmatmul.f32.gmra.mxu0 %v266
        %v330 = vpop.f32.mrf.mxu0
        %v331 = vadd.f32 %v242, %v330
        %332 = vmatmul.f32.gmra.mxu0 %v269
        %v333 = vpop.f32.mrf.mxu0
        %v334 = vadd.f32 %v243, %v333
        %335 = vmatmul.f32.gmra.mxu0 %v272
        %v336 = vpop.f32.mrf.mxu0
        %v337 = vadd.f32 %v244, %v336
        %338 = vmatmul.f32.gmra.mxu0 %v275
        %v339 = vpop.f32.mrf.mxu0
        %v340 = vadd.f32 %v245, %v339
        %341 = vmatmul.f32.gmra.mxu0 %v278
        %v342 = vpop.f32.mrf.mxu0
        %v343 = vadd.f32 %v246, %v342
        %344 = vmatmul.f32.gmra.mxu0 %v281
        %v345 = vpop.f32.mrf.mxu0
        %v346 = vadd.f32 %v247, %v345
        %347 = vmatmul.f32.gmra.mxu0 %v284
        %v348 = vpop.f32.mrf.mxu0
        %v349 = vadd.f32 %v248, %v348
        %350 = vmatmul.f32.gmra.mxu0 %v287
        %v351 = vpop.f32.mrf.mxu0
        %v352 = vadd.f32 %v249, %v351
        %353 = vmatmul.f32.gmra.mxu0 %v290
        %v354 = vpop.f32.mrf.mxu0
        %v355 = vadd.f32 %v250, %v354
        %356 = vmatmul.f32.gmra.mxu0 %v293
        %v357 = vpop.f32.mrf.mxu0
        %v358 = vadd.f32 %v251, %v357
        %359 = vmatmul.f32.gmra.mxu0 %v296
        %v360 = vpop.f32.mrf.mxu0
        %v361 = vadd.f32 %v252, %v360
        %362 = vmatmul.f32.gmra.mxu0 %v299
        %v363 = vpop.f32.mrf.mxu0
        %v364 = vadd.f32 %v253, %v363
        %365 = vmatmul.f32.gmra.mxu0 %v302
        %v366 = vpop.f32.mrf.mxu0
        %v367 = vadd.f32 %v254, %v366
        %368 = vdwg.mxu0
        %369 = vst [vmem:[%s204] sm:$0xff] %v322
        %370 = vst [vmem:[%s204 + $0x8] sm:$0xff] %v325
        %371 = vst [vmem:[%s204 + $0x10] sm:$0xff] %v328
        %372 = vst [vmem:[%s204 + $0x18] sm:$0xff] %v331
        %373 = vst [vmem:[%s204 + $0x20] sm:$0xff] %v334
        %374 = vst [vmem:[%s204 + $0x28] sm:$0xff] %v337
        %375 = vst [vmem:[%s204 + $0x30] sm:$0xff] %v340
        %376 = vst [vmem:[%s204 + $0x38] sm:$0xff] %v343
        %377 = vst [vmem:[%s204 + $0x40] sm:$0xff] %v346
        %378 = vst [vmem:[%s204 + $0x48] sm:$0xff] %v349
        %379 = vst [vmem:[%s204 + $0x50] sm:$0xff] %v352
        %380 = vst [vmem:[%s204 + $0x58] sm:$0xff] %v355
        %381 = vst [vmem:[%s204 + $0x60] sm:$0xff] %v358
        %382 = vst [vmem:[%s204 + $0x68] sm:$0xff] %v361
        %383 = vst [vmem:[%s204 + $0x70] sm:$0xff] %v364
        %384 = vst [vmem:[%s204 + $0x78] sm:$0xff] %v367
        %s385 = sand.u32 %s114, 1
        %s386 = scalar_lea.sflag [#allocation3], %s385
        %s387 = sand.u32 %s114, 1
        %s388 = smul.addr %s387, 128
        %s389 = scalar_lea.vmem [#allocation2], %s388
        // Predicated region
        $region33: #{tpu_custom_call.1} parent=31 // pred_check
          %p390 = pneg %p124
        $region34: #{tpu_custom_call.1} parent=31 // pred_check_branch
          %392 = sbr.rel (%p390) target = $region36
        $region35: #{tpu_custom_call.1} parent=31 // pred_region
          %s393 = smul.u32 16, %s21
          %395 = vsyncadd %s386, 0
          %s396 = smul.addr %s22, 16
          %s397 = sadd.s32 %s393, %s396
          %s398 = smul.addr %s397, 8
          %s399 = scalar_lea.hbm %s3, %s398
          %s400 = sshll.u32 %s389, 4
          %s401 = int_to_ptr.vmem [resolvable:$true] %s400
          %s402 = sshll.u32 %s399, 4
          %s403 = int_to_ptr.hbm [resolvable:$true] %s402
          %408 = dma.vmem_to_hbm [thread:$0]  %s401, 2048, %s403, %s386, 128, 128, 8
        $region36: #{tpu_custom_call.1} parent=31 // pred_fallthru
          _
      $region32: #{tpu_custom_call.1} parent=5 // pred_fallthru
        _
      %p409 = scmp.le.s32.totalorder 2, %s12
      // Predicated region
      $region37: #{tpu_custom_call.1} parent=5 // pred_check
        %p410 = pneg %p409
      $region38: #{tpu_custom_call.1} parent=5 // pred_check_branch
        %412 = sbr.rel (%p410) target = $region40
      $region39: #{tpu_custom_call.1} parent=5 // pred_region
        %s413 = ssub.s32 %s12, 2
        // Predicated region
        $region41: #{tpu_custom_call.1} parent=39 // pred_check
          %p414 = pneg %p130
        $region42: #{tpu_custom_call.1} parent=39 // pred_check_branch
          %416 = sbr.rel (%p414) target = $region44
        $region43: #{tpu_custom_call.1} parent=39 // pred_region
          %s417 = sand.u32 %s115, 1
          %s418 = scalar_lea.sflag [#allocation3], %s417
          %s419 = sand.u32 %s115, 1
          %s420 = smul.addr %s419, 128
          %s421 = scalar_lea.vmem [#allocation2], %s420
          %423 = dma.done %s418, 2048
        $region44: #{tpu_custom_call.1} parent=39 // pred_fallthru
          _
      $region40: #{tpu_custom_call.1} parent=5 // pred_fallthru
        _
    $region6: #{tpu_custom_call.1} parent=1 // loop_footer
      %s16 = sadd.s32 1, %s12
    $region7: #{tpu_custom_call.1} parent=1 // loop_footer_branch
      %11 = sbr.rel target = $region3
    $region8: #{tpu_custom_call.1} parent=1 // loop_exit
      _
    %424 = vsyncpa [#allocation3], 1
    %s425 = scalar_lea.sflag [#allocation3], 1
    %426 = vsyncpa %s425, 1

</llo_original>
